<compile_context>
chip_gen: v7x
topology: tpu7x:2x2x1
jax: 0.10.0
libtpu: 0.0.40
codegen_flags: <defaults>
</compile_context>

<pallas_src>
import jax
import jax.numpy as jnp
from jax.experimental import pallas as pl
from jax.experimental.pallas import tpu as pltpu


_LANES = 128
_MAX_TR = 2048       # x-tile 2 MiB + out-tile 1 MiB -> ~6 MiB double-buffered
_TARGET_STEPS = 8    # aim for >= 8 grid steps: pipelining + v7x dual-TC


def _binary_classifier_kernel(w_ref, b_ref, x_ref, o_ref):
    # w_ref: SMEM (2,)          -- [w00, w01]
    # b_ref: SMEM (1,)          -- [b0]
    # x_ref: VMEM (2, TR, 128)  -- feature axis leading, batch dense on
    #                              (sublane, lane) = (TR, 128)
    # o_ref: VMEM (TR, 128)
    w0 = w_ref[0]
    w1 = w_ref[1]
    b = b_ref[0]
    x0 = x_ref[0]                      # (TR, 128) dense tile
    x1 = x_ref[1]                      # (TR, 128) dense tile
    z = x0 * w0 + x1 * w1 + b          # pure VPU mul-add (no MXU for K=2/N=1)
    o_ref[...] = jax.nn.sigmoid(z)     # logistic -> EUP (free slot here)


def _round_up(n, m):
    return ((n + m - 1) // m) * m


@jax.jit
def binary_classifier(x, weight, bias):
    """Forward pass of BinaryClassifier: sigmoid(x @ W^T + b).

    x:      (B, 2) float32
    weight: (1, 2) float32  (PyTorch nn.Linear layout)
    bias:   (1,)   float32
    returns (B, 1) float32
    """
    B = x.shape[0]

    # --- tile selection -----------------------------------------------------
    rows = pl.cdiv(B, _LANES)          # number of 128-wide batch groups
    if rows <= _TARGET_STEPS:
        # Tiny batch: one grid step; block == full array (no 8-multiple rule).
        tr = rows
    else:
        # >= _TARGET_STEPS steps when possible, sublane-aligned, capped so the
        # double-buffered VMEM footprint stays a few MiB on every generation.
        tr = min(_MAX_TR, _round_up(pl.cdiv(rows, _TARGET_STEPS), 8))
    rows_pad = _round_up(rows, tr)
    bp = rows_pad * _LANES
    steps = rows_pad // tr

    # --- layout (single fused pad+transpose pass; trailing reshape is free) --
    x = jnp.asarray(x, jnp.float32)
    if bp != B:
        x = jnp.pad(x, ((0, bp - B), (0, 0)))
    xt = x.T.reshape(2, rows_pad, _LANES)
    # NOTE: the (B,2)->(2,B) transpose is the one remaining extra XLA pass; a
    # zero-copy interleaved feed with in-kernel de-interleave would remove it
    # at the cost of a lane-compaction step.

    w_flat = jnp.asarray(weight, jnp.float32).reshape(2)
    b_flat = jnp.asarray(bias, jnp.float32).reshape(1)

    out = pl.pallas_call(
        _binary_classifier_kernel,
        out_shape=jax.ShapeDtypeStruct((rows_pad, _LANES), jnp.float32),
        grid_spec=pl.GridSpec(
            grid=(steps,),
            in_specs=[
                pl.BlockSpec(memory_space=pltpu.MemorySpace.SMEM),   # weight (2,)
                pl.BlockSpec(memory_space=pltpu.MemorySpace.SMEM),   # bias   (1,)
                pl.BlockSpec((2, tr, _LANES), lambda i: (0, i, 0)),  # x tile
            ],
            out_specs=pl.BlockSpec((tr, _LANES), lambda i: (i, 0)),
        ),
        compiler_params=pltpu.CompilerParams(
            dimension_semantics=("parallel",),    # shard batch steps across TCs (v7x)
        ),
        cost_estimate=pl.CostEstimate(
            flops=4 * bp,            # 2 mul + 2 add per row
            transcendentals=bp,      # one sigmoid per row
            bytes_accessed=12 * bp,  # 8 B/row in + 4 B/row out
        ),
    )(w_flat, b_flat, xt)

    # (rows_pad,128) -> (bp,) is a free contiguous reshape; the [:B] slice is a
    # no-op when B already matches the tiling (multiple of 128*tr).
    return out.reshape(-1)[:B].reshape(B, 1)


if __name__ == "__main__":
    key = jax.random.PRNGKey(0)
    kx, kw, kb = jax.random.split(key, 3)

    # Deterministic params matching nn.Linear(2, 1) shapes.
    weight = jax.random.uniform(kw, (1, 2), dtype=jnp.float32,
                                minval=-0.5, maxval=0.5)
    bias = jax.random.uniform(kb, (1,), dtype=jnp.float32,
                              minval=-0.5, maxval=0.5)

    # Small batch (single-step grid path), as in the original module usage.
    batch = 8
    x = jax.random.normal(kx, (batch, 2), dtype=jnp.float32)
    out = binary_classifier(x, weight, bias)
    jax.block_until_ready(out)
    ref = jax.nn.sigmoid(x @ weight.T + bias)
    assert out.shape == (batch, 1)
    assert jnp.allclose(out, ref, atol=1e-5, rtol=1e-5)

    # Larger batch to exercise the multi-step pipelined grid path.
    batch2 = 4096
    x2 = jax.random.normal(kx, (batch2, 2), dtype=jnp.float32)
    out2 = binary_classifier(x2, weight, bias)
    jax.block_until_ready(out2)
    ref2 = jax.nn.sigmoid(x2 @ weight.T + bias)
    assert out2.shape == (batch2, 1)
    assert jnp.allclose(out2, ref2, atol=1e-5, rtol=1e-5)

    print("KERNEL_OK")
</pallas_src>

<mosaic_0001>
module attributes {stable_mosaic.version = 11 : i64} {
  func.func @_binary_classifier_kernel(%arg0: i32, %arg1: memref<2xf32, #tpu.memory_space<smem>>, %arg2: memref<1xf32, #tpu.memory_space<smem>>, %arg3: memref<2x1x128xf32, #tpu.memory_space<vmem>>, %arg4: memref<1x128xf32, #tpu.memory_space<vmem>>) attributes {dimension_semantics = [#tpu.dimension_semantics<parallel>], iteration_bounds = array<i64: 1>, scalar_prefetch = 0 : i64, scratch_operands = 0 : i64, tpu.core_type = #tpu.core_type<tc>, window_params = [{transform_indices = @transform_0, window_bounds = array<i64: 2>}, {transform_indices = @transform_1, window_bounds = array<i64: 1>}, {transform_indices = @transform_2, window_bounds = array<i64: 2, 1, 128>}, {transform_indices = @transform_3, window_bounds = array<i64: 1, 128>}]} {
    %c0 = arith.constant 0 : index
    %0 = memref.load %arg1[%c0] : memref<2xf32, #tpu.memory_space<smem>>
    %c1 = arith.constant 1 : index
    %1 = memref.load %arg1[%c1] : memref<2xf32, #tpu.memory_space<smem>>
    %c0_0 = arith.constant 0 : index
    %2 = memref.load %arg2[%c0_0] : memref<1xf32, #tpu.memory_space<smem>>
    %c0_1 = arith.constant 0 : index
    %c0_2 = arith.constant 0 : index
    %c0_3 = arith.constant 0 : index
    %3 = vector.load %arg3[%c0_1, %c0_2, %c0_3] : memref<2x1x128xf32, #tpu.memory_space<vmem>>, vector<1x1x128xf32>
    %4 = vector.shape_cast %3 : vector<1x1x128xf32> to vector<1x128xf32>
    %c1_4 = arith.constant 1 : index
    %c0_5 = arith.constant 0 : index
    %c0_6 = arith.constant 0 : index
    %5 = vector.load %arg3[%c1_4, %c0_5, %c0_6] : memref<2x1x128xf32, #tpu.memory_space<vmem>>, vector<1x1x128xf32>
    %6 = vector.shape_cast %5 : vector<1x1x128xf32> to vector<1x128xf32>
    %7 = vector.broadcast %0 : f32 to vector<1x128xf32>
    %8 = arith.mulf %4, %7 : vector<1x128xf32>
    %9 = vector.broadcast %1 : f32 to vector<1x128xf32>
    %10 = arith.mulf %6, %9 : vector<1x128xf32>
    %11 = arith.addf %8, %10 : vector<1x128xf32>
    %12 = vector.broadcast %2 : f32 to vector<1x128xf32>
    %13 = arith.addf %11, %12 : vector<1x128xf32>
    %14 = arith.negf %13 : vector<1x128xf32>
    %15 = math.exp %14 : vector<1x128xf32>
    %cst = arith.constant 1.000000e+00 : f32
    %16 = vector.broadcast %cst : f32 to vector<1x128xf32>
    %17 = arith.addf %16, %15 : vector<1x128xf32>
    %18 = arith.divf %16, %17 : vector<1x128xf32>
    %c0_7 = arith.constant 0 : index
    %c0_8 = arith.constant 0 : index
    %19 = vector.load %arg4[%c0_7, %c0_8] : memref<1x128xf32, #tpu.memory_space<vmem>>, vector<1x128xf32>
    tpu.vector_store %arg4[%c0_7, %c0_8], %18 {strides = array<i32>} : memref<1x128xf32, #tpu.memory_space<vmem>>, vector<1x128xf32>,
    return
  }
  func.func @transform_0(%arg0: i32) -> i32 {
    %c0_i32 = arith.constant 0 : i32
    %c0_i32_0 = arith.constant 0 : i32
    return %c0_i32 : i32
  }
  func.func @transform_1(%arg0: i32) -> i32 {
    %c0_i32 = arith.constant 0 : i32
    %c0_i32_0 = arith.constant 0 : i32
    return %c0_i32 : i32
  }
  func.func @transform_2(%arg0: i32) -> (i32, i32, i32) {
    %c0_i32 = arith.constant 0 : i32
    %c0_i32_0 = arith.constant 0 : i32
    %c0_i32_1 = arith.constant 0 : i32
    return %c0_i32, %arg0, %c0_i32_0 : i32, i32, i32
  }
  func.func @transform_3(%arg0: i32) -> (i32, i32) {
    %c0_i32 = arith.constant 0 : i32
    %c0_i32_0 = arith.constant 0 : i32
    return %arg0, %c0_i32 : i32, i32
  }
}

</mosaic_0001>

<llo_original>
// kernel: binary_classifier.1
$region0: #{binary_classifier.1}
  #allocation0 [shape = 'u32[]', space=smem, size = 0x4, offset = 0x4, fixed_abs, tag = 'smem constant byte address 0x4 - core index']
  #allocation1 [shape = 'u32[144,128]{1,0:T(1,128)}', space=vmem, size = 0x12000, scoped, tag = 'internal scratch']
  #allocation2 [shape = 'f32[1]{0:T(128)S(6)}', space=smem, size = 0x200, scoped, tag = 'scoped memory for binary_classifier.1']
  %s0 = inlined_call_operand.vmem [shape: f32[2], index: 0, kind: input, shape index: {}]
  %s1 = inlined_call_operand.<no memory space> [shape: f32[1], index: 1, kind: input, shape index: {}]
  %s2 = inlined_call_operand.vmem [shape: f32[2,1,128], index: 2, kind: input, shape index: {}]
  %s3 = inlined_call_operand.vmem [shape: f32[1,128], index: 3, kind: output, shape index: {}]
  %s4 = sld [smem:[#allocation0]]
  $region26: #{binary_classifier.1} parent=0
    _
  %s6 = ssub.s32 1, %s4
  %s7 = scalar_select 0, %s6, %s4
  %8 = sst [smem:[#allocation2]] %s1
  $region1: #{binary_classifier.1} parent=0
    #allocation3 [shape = 'u8[512]{0}', space=smem, size = 0x200, scoped, tag = 'input window, operand 0, single buffered']
    #allocation4 [shape = 's32[1]{0}', space=sflag, size = 0x4, scoped, tag = 'scoped memory for binary_classifier.1']
    %9 = vsyncpa [#allocation4], 0
    // Predicated region
    $region2: #{binary_classifier.1} parent=1 // pred_check
      _
    $region3: #{binary_classifier.1} parent=1 // pred_check_branch
      %11 = sbr.rel (0) target = $region5
    $region4: #{binary_classifier.1} parent=1 // pred_region
      %s13 = ssub.s32 16, 16
      %14 = vsyncadd [#allocation4], %s13
      %s16 = sshll.u32 %s0, 4
      %s17 = int_to_ptr.vmem [resolvable:$true] %s16
      %19 = dma.vmem_to_smem %s17, 16, [#allocation3], [#allocation4]
    $region5: #{binary_classifier.1} parent=1 // pred_fallthru
      _
    // Predicated region
    $region6: #{binary_classifier.1} parent=1 // pred_check
      _
    $region7: #{binary_classifier.1} parent=1 // pred_check_branch
      %21 = sbr.rel (0) target = $region9
    $region8: #{binary_classifier.1} parent=1 // pred_region
      _
    $region9: #{binary_classifier.1} parent=1 // pred_fallthru
      _
    // Predicated region
    $region10: #{binary_classifier.1} parent=1 // pred_check
      _
    $region11: #{binary_classifier.1} parent=1 // pred_check_branch
      %23 = sbr.rel (0) target = $region13
    $region12: #{binary_classifier.1} parent=1 // pred_region
      _
    $region13: #{binary_classifier.1} parent=1 // pred_fallthru
      _
    // Predicated region
    $region14: #{binary_classifier.1} parent=1 // pred_check
      _
    $region15: #{binary_classifier.1} parent=1 // pred_check_branch
      %25 = sbr.rel (0) target = $region17
    $region16: #{binary_classifier.1} parent=1 // pred_region
      %26 = dma.done [#allocation4], 16
    $region17: #{binary_classifier.1} parent=1 // pred_fallthru
      _
    %27 = sfence
    %s28 = sld [smem:[#allocation3]]
    %s29 = sld [smem:[#allocation3 + $0x1]]
    %s30 = sld [smem:[#allocation2]]
    %v31 = vld [vmem:[%s2] sm:$0x1]
    %s32 = scalar_lea.vmem %s2, 1
    %v33 = vld [vmem:[%s32] sm:$0x1]
    %v34 = vstv %s28
    %v35 = vmul.f32 %v31, %v34
    %v36 = vstv %s29
    %v37 = vmul.f32 %v33, %v36
    %v38 = vadd.f32 %v35, %v37
    %v39 = vstv %s30
    %v40 = vadd.f32 %v38, %v39
    %v41 = vxor.u32 %v40, 2147483648
    %v42 = vmul.f32 %v41, 1.442695
    %v43 = vpow.pop %v42
    %v44 = vadd.f32 %v43, 1.0
    %v45 = vrcp.pop %v44
    %v46 = vmul.f32 1.0, %v45
    %47 = vst [vmem:[%s3] sm:$0x1] %v46
    // Predicated region
    $region18: #{binary_classifier.1} parent=1 // pred_check
      _
    $region19: #{binary_classifier.1} parent=1 // pred_check_branch
      %49 = sbr.rel (0) target = $region21
    $region20: #{binary_classifier.1} parent=1 // pred_region
      _
    $region21: #{binary_classifier.1} parent=1 // pred_fallthru
      _
    // Predicated region
    $region22: #{binary_classifier.1} parent=1 // pred_check
      _
    $region23: #{binary_classifier.1} parent=1 // pred_check_branch
      %51 = sbr.rel (0) target = $region25
    $region24: #{binary_classifier.1} parent=1 // pred_region
      _
    $region25: #{binary_classifier.1} parent=1 // pred_fallthru
      _
    %52 = vsyncpa [#allocation4], 1

</llo_original>
